<compile_context>
chip_gen: v6e
topology: v6e:2x2x1
jax: 0.10.0
libtpu: 0.0.40
codegen_flags: <defaults>
</compile_context>

<pallas_src>
import functools

import jax
import jax.numpy as jnp
from jax.experimental import pallas as pl
from jax.experimental.pallas import tpu as pltpu


def _round_up(x, m):
    return ((x + m - 1) // m) * m


def neuralnet_kernel(x_ref, w1_ref, b1_ref, wh_ref, bh_ref, out_ref,
                     *, n_sigmoid):
    x = x_ref[...]
    w1 = w1_ref[...]
    wh = wh_ref[...]

    # fc1 + ReLU.  If the resident weights were packed as bf16, only the
    # per-tile activation cast happens in-kernel; f32 weights -> no-op cast.
    h = jnp.dot(x.astype(w1.dtype), w1,
                preferred_element_type=jnp.float32) + b1_ref[...]
    h = jnp.maximum(h, 0.0)

    # Fused heads: one matmul into a narrow (tile_b, slab_width) block.
    logits = jnp.dot(h.astype(wh.dtype), wh,
                     preferred_element_type=jnp.float32) + bh_ref[...]

    # Sigmoid on the first n_sigmoid columns only (EUP tanh identity);
    # remaining columns carry raw task2 logits / zero padding.
    sig = 0.5 * jnp.tanh(0.5 * logits) + 0.5
    col = jax.lax.broadcasted_iota(jnp.int32, logits.shape, 1)
    out_ref[...] = jnp.where(col < n_sigmoid, sig, logits)


def pack_head_params(w1, b1, w2, b2, w3, b3, *, use_bf16_matmul=False):
    """One-time parameter prep: pack + zero-pad the two head weights/biases
    into a single narrow lane slab, optionally down-casting weights to bf16.
    Call this once at parameter-load time, NOT per forward."""
    hidden = w1.shape[1]
    n1 = w2.shape[1]          # sigmoid head width (1)
    n2 = w3.shape[1]          # task2 head width (4)
    width = max(8, _round_up(n1 + n2, 8))   # small, lane-padded slab

    w_head = jnp.zeros((hidden, width), jnp.float32)
    w_head = w_head.at[:, :n1].set(w2).at[:, n1:n1 + n2].set(w3)
    b_head = jnp.zeros((1, width), jnp.float32)
    b_head = b_head.at[:, :n1].set(b2).at[:, n1:n1 + n2].set(b3)

    if use_bf16_matmul:
        # Cast resident weights once here (not per grid step in the kernel).
        w1 = w1.astype(jnp.bfloat16)
        w_head = w_head.astype(jnp.bfloat16)

    return (w1, b1, w_head, b_head), (n1, n2)


def neuralnet_forward(x, w1, b1, w_head, b_head, *, n1, n2, block_b=1024):
    B, in_f = x.shape
    hidden = w1.shape[1]
    width = w_head.shape[1]
    assert n1 + n2 <= width

    # Batch tiling: full batch if small; for B >= 16 ensure at least two grid
    # steps so the "parallel" axis can shard across both TensorCores on v7x.
    tile_b = min(B, block_b)
    if B >= 16:
        tile_b = min(tile_b, _round_up(pl.cdiv(B, 2), 8))
    grid = (pl.cdiv(B, tile_b),)
    # NOTE: ragged last tile (B % tile_b != 0) is safe here because every row
    # is independent (no cross-row reduction).

    # VMEM-budget guard for the resident-weight strategy (constant index_maps
    # keep w1/w_head VMEM-resident for the whole grid; double-buffered tiles
    # for x/out).  If this ever trips, add a K/hidden grid axis or store the
    # weights bf16.
    resident = (w1.size * w1.dtype.itemsize + w_head.size * w_head.dtype.itemsize
                + b1.size * b1.dtype.itemsize + b_head.size * b_head.dtype.itemsize)
    tiles = 2 * tile_b * (in_f + width) * 4
    assert 2 * resident + tiles < 48 * 1024 * 1024, (
        "resident-weight strategy exceeds the v7x VMEM budget; "
        "add a reduction grid axis or use bf16 weights")

    kernel = functools.partial(neuralnet_kernel, n_sigmoid=n1)

    slab = pl.pallas_call(
        kernel,
        out_shape=jax.ShapeDtypeStruct((B, width), jnp.float32),
        grid=grid,
        in_specs=[
            # batch-tiled activations
            pl.BlockSpec((tile_b, in_f), lambda i: (i, 0)),
            # weights/biases: constant index_map -> VMEM-resident across steps
            pl.BlockSpec((in_f, hidden), lambda i: (0, 0)),
            pl.BlockSpec((1, hidden), lambda i: (0, 0)),
            pl.BlockSpec((hidden, width), lambda i: (0, 0)),
            pl.BlockSpec((1, width), lambda i: (0, 0)),
        ],
        out_specs=pl.BlockSpec((tile_b, width), lambda i: (i, 0)),
        compiler_params=pltpu.CompilerParams(
            dimension_semantics=("parallel",)),
    )(x, w1, b1, w_head, b_head)

    out1 = slab[:, :n1]               # sigmoid head
    out2 = slab[:, n1:n1 + n2]        # raw task2 logits (matches PyTorch)
    return out1, out2


def reference_forward(x, w1, b1, w2, b2, w3, b3):
    h = jnp.maximum(x @ w1 + b1, 0.0)
    out1 = jax.nn.sigmoid(h @ w2 + b2)
    out2 = h @ w3 + b3
    return out1, out2


if __name__ == "__main__":
    # Module config: NeuralNet(input_size=32, hidden_size=32, n_classes=2,
    #                          task2_outsize=4)  -> out_size = 1 (sigmoid head)
    batch, input_size, hidden_size, task2_outsize = 8, 32, 32, 4
    out_size = 1  # n_classes <= 2

    key = jax.random.PRNGKey(0)
    k_x, k_w1, k_b1, k_w2, k_b2, k_w3, k_b3 = jax.random.split(key, 7)

    x = jax.random.normal(k_x, (batch, input_size), dtype=jnp.float32)

    # Deterministic parameter init (weights stored as (in, out), i.e. W.T).
    w1 = jax.random.normal(k_w1, (input_size, hidden_size), dtype=jnp.float32) * 0.1
    b1 = jax.random.normal(k_b1, (1, hidden_size), dtype=jnp.float32) * 0.1
    w2 = jax.random.normal(k_w2, (hidden_size, out_size), dtype=jnp.float32) * 0.1
    b2 = jax.random.normal(k_b2, (1, out_size), dtype=jnp.float32) * 0.1
    w3 = jax.random.normal(k_w3, (hidden_size, task2_outsize), dtype=jnp.float32) * 0.1
    b3 = jax.random.normal(k_b3, (1, task2_outsize), dtype=jnp.float32) * 0.1

    # One-time parameter packing (hoisted out of the per-call path).
    (pw1, pb1, w_head, b_head), (n1, n2) = pack_head_params(
        w1, b1, w2, b2, w3, b3, use_bf16_matmul=False)
    jax.block_until_ready((pw1, pb1, w_head, b_head))

    fwd = jax.jit(functools.partial(neuralnet_forward, n1=n1, n2=n2))
    out1, out2 = fwd(x, pw1, pb1, w_head, b_head)
    jax.block_until_ready((out1, out2))

    ref1, ref2 = reference_forward(x, w1, b1, w2, b2, w3, b3)
    assert out1.shape == (batch, out_size)
    assert out2.shape == (batch, task2_outsize)
    assert jnp.allclose(out1, ref1, atol=1e-5, rtol=1e-5)
    assert jnp.allclose(out2, ref2, atol=1e-5, rtol=1e-5)

    print("KERNEL_OK")
</pallas_src>

<mosaic_0001>
module attributes {stable_mosaic.version = 11 : i64} {
  func.func @neuralnet_kernel(%arg0: i32, %arg1: memref<8x32xf32, #tpu.memory_space<vmem>>, %arg2: memref<32x32xf32, #tpu.memory_space<vmem>>, %arg3: memref<1x32xf32, #tpu.memory_space<vmem>>, %arg4: memref<32x8xf32, #tpu.memory_space<vmem>>, %arg5: memref<1x8xf32, #tpu.memory_space<vmem>>, %arg6: memref<8x8xf32, #tpu.memory_space<vmem>>) attributes {dimension_semantics = [#tpu.dimension_semantics<parallel>], iteration_bounds = array<i64: 1>, scalar_prefetch = 0 : i64, scratch_operands = 0 : i64, tpu.core_type = #tpu.core_type<tc>, window_params = [{transform_indices = @transform_0, window_bounds = array<i64: 8, 32>}, {pipeline_mode = #tpu.pipeline_mode<synchronous>, transform_indices = @transform_1, window_bounds = array<i64: 32, 32>}, {pipeline_mode = #tpu.pipeline_mode<synchronous>, transform_indices = @transform_2, window_bounds = array<i64: 1, 32>}, {pipeline_mode = #tpu.pipeline_mode<synchronous>, transform_indices = @transform_3, window_bounds = array<i64: 32, 8>}, {pipeline_mode = #tpu.pipeline_mode<synchronous>, transform_indices = @transform_4, window_bounds = array<i64: 1, 8>}, {transform_indices = @transform_5, window_bounds = array<i64: 8, 8>}]} {
    %c0 = arith.constant 0 : index
    %c0_0 = arith.constant 0 : index
    %0 = vector.load %arg1[%c0, %c0_0] : memref<8x32xf32, #tpu.memory_space<vmem>>, vector<8x32xf32>
    %c0_1 = arith.constant 0 : index
    %c0_2 = arith.constant 0 : index
    %1 = vector.load %arg2[%c0_1, %c0_2] : memref<32x32xf32, #tpu.memory_space<vmem>>, vector<32x32xf32>
    %c0_3 = arith.constant 0 : index
    %c0_4 = arith.constant 0 : index
    %2 = vector.load %arg4[%c0_3, %c0_4] : memref<32x8xf32, #tpu.memory_space<vmem>>, vector<32x8xf32>
    %cst = arith.constant dense<0.000000e+00> : vector<8x32xf32>
    %3 = tpu.matmul %0, %1, %cst {dimension_numbers = #tpu.dot_dimension_numbers<[1], [0], [0], [1], [0, 0, 1, 1], [], []>} : vector<8x32xf32>, vector<32x32xf32>, vector<8x32xf32> -> vector<8x32xf32>
    %c0_5 = arith.constant 0 : index
    %c0_6 = arith.constant 0 : index
    %4 = vector.load %arg3[%c0_5, %c0_6] : memref<1x32xf32, #tpu.memory_space<vmem>>, vector<1x32xf32>
    %5 = vector.broadcast %4 : vector<1x32xf32> to vector<8x32xf32>
    %6 = arith.addf %3, %5 : vector<8x32xf32>
    %cst_7 = arith.constant 0.000000e+00 : f32
    %7 = vector.broadcast %cst_7 : f32 to vector<8x32xf32>
    %8 = arith.maximumf %6, %7 : vector<8x32xf32>
    %cst_8 = arith.constant dense<0.000000e+00> : vector<8x8xf32>
    %9 = tpu.matmul %8, %2, %cst_8 {dimension_numbers = #tpu.dot_dimension_numbers<[1], [0], [0], [1], [0, 0, 1, 1], [], []>} : vector<8x32xf32>, vector<32x8xf32>, vector<8x8xf32> -> vector<8x8xf32>
    %c0_9 = arith.constant 0 : index
    %c0_10 = arith.constant 0 : index
    %10 = vector.load %arg5[%c0_9, %c0_10] : memref<1x8xf32, #tpu.memory_space<vmem>>, vector<1x8xf32>
    %11 = vector.broadcast %10 : vector<1x8xf32> to vector<8x8xf32>
    %12 = arith.addf %9, %11 : vector<8x8xf32>
    %cst_11 = arith.constant 5.000000e-01 : f32
    %13 = vector.broadcast %cst_11 : f32 to vector<8x8xf32>
    %14 = arith.mulf %13, %12 : vector<8x8xf32>
    %15 = math.tanh %14 : vector<8x8xf32>
    %cst_12 = arith.constant 5.000000e-01 : f32
    %16 = vector.broadcast %cst_12 : f32 to vector<8x8xf32>
    %17 = arith.mulf %16, %15 : vector<8x8xf32>
    %cst_13 = arith.constant 5.000000e-01 : f32
    %18 = vector.broadcast %cst_13 : f32 to vector<8x8xf32>
    %19 = arith.addf %17, %18 : vector<8x8xf32>
    %20 = tpu.iota {dimensions = array<i32: 1>} : vector<8x8xi32>
    %c1_i32 = arith.constant 1 : i32
    %21 = vector.broadcast %c1_i32 : i32 to vector<8x8xi32>
    %22 = arith.cmpi slt, %20, %21 : vector<8x8xi32>
    %23 = arith.select %22, %19, %12 : vector<8x8xi1>, vector<8x8xf32>
    %c0_14 = arith.constant 0 : index
    %c0_15 = arith.constant 0 : index
    %24 = vector.load %arg6[%c0_14, %c0_15] : memref<8x8xf32, #tpu.memory_space<vmem>>, vector<8x8xf32>
    tpu.vector_store %arg6[%c0_14, %c0_15], %23 {strides = array<i32>} : memref<8x8xf32, #tpu.memory_space<vmem>>, vector<8x8xf32>,
    return
  }
  func.func @transform_0(%arg0: i32) -> (i32, i32) {
    %c0_i32 = arith.constant 0 : i32
    %c0_i32_0 = arith.constant 0 : i32
    return %arg0, %c0_i32 : i32, i32
  }
  func.func @transform_1(%arg0: i32) -> (i32, i32) {
    %c0_i32 = arith.constant 0 : i32
    %c0_i32_0 = arith.constant 0 : i32
    %c0_i32_1 = arith.constant 0 : i32
    return %c0_i32, %c0_i32_0 : i32, i32
  }
  func.func @transform_2(%arg0: i32) -> (i32, i32) {
    %c0_i32 = arith.constant 0 : i32
    %c0_i32_0 = arith.constant 0 : i32
    %c0_i32_1 = arith.constant 0 : i32
    return %c0_i32, %c0_i32_0 : i32, i32
  }
  func.func @transform_3(%arg0: i32) -> (i32, i32) {
    %c0_i32 = arith.constant 0 : i32
    %c0_i32_0 = arith.constant 0 : i32
    %c0_i32_1 = arith.constant 0 : i32
    return %c0_i32, %c0_i32_0 : i32, i32
  }
  func.func @transform_4(%arg0: i32) -> (i32, i32) {
    %c0_i32 = arith.constant 0 : i32
    %c0_i32_0 = arith.constant 0 : i32
    %c0_i32_1 = arith.constant 0 : i32
    return %c0_i32, %c0_i32_0 : i32, i32
  }
  func.func @transform_5(%arg0: i32) -> (i32, i32) {
    %c0_i32 = arith.constant 0 : i32
    %c0_i32_0 = arith.constant 0 : i32
    return %arg0, %c0_i32 : i32, i32
  }
}

</mosaic_0001>

<llo_original>
// kernel: neuralnet_forward.1
$region0: #{neuralnet_forward.1}
  #allocation0 [shape = 'u32[]', space=smem, size = 0x4, offset = 0x4, fixed_abs, tag = 'smem constant byte address 0x4 - core index']
  #allocation1 [shape = 'u32[144,128]{1,0:T(1,128)}', space=vmem, size = 0x12000, scoped, tag = 'internal scratch']
  %s0 = inlined_call_operand.vmem [shape: f32[8,32], index: 0, kind: input, shape index: {}]
  %s1 = inlined_call_operand.vmem [shape: f32[32,32], index: 1, kind: input, shape index: {}]
  %s2 = inlined_call_operand.vmem [shape: f32[1,32], index: 2, kind: input, shape index: {}]
  %s3 = inlined_call_operand.vmem [shape: f32[32,8], index: 3, kind: input, shape index: {}]
  %s4 = inlined_call_operand.vmem [shape: f32[1,8], index: 4, kind: input, shape index: {}]
  %s5 = inlined_call_operand.vmem [shape: f32[8,8], index: 5, kind: output, shape index: {}]
  %s6 = sld [smem:[#allocation0]]
  $region30: #{neuralnet_forward.1} parent=0
    _
  %s8 = ssub.s32 1, %s6
  %s9 = scalar_select 0, %s8, %s6
  // Predicated region
  $region2: #{neuralnet_forward.1} parent=0 // pred_check
    _
  $region3: #{neuralnet_forward.1} parent=0 // pred_check_branch
    %11 = sbr.rel (0) target = $region5
  $region4: #{neuralnet_forward.1} parent=0 // pred_region
    _
  $region5: #{neuralnet_forward.1} parent=0 // pred_fallthru
    _
  // Predicated region
  $region6: #{neuralnet_forward.1} parent=0 // pred_check
    _
  $region7: #{neuralnet_forward.1} parent=0 // pred_check_branch
    %13 = sbr.rel (0) target = $region9
  $region8: #{neuralnet_forward.1} parent=0 // pred_region
    _
  $region9: #{neuralnet_forward.1} parent=0 // pred_fallthru
    _
  // Predicated region
  $region10: #{neuralnet_forward.1} parent=0 // pred_check
    _
  $region11: #{neuralnet_forward.1} parent=0 // pred_check_branch
    %15 = sbr.rel (0) target = $region13
  $region12: #{neuralnet_forward.1} parent=0 // pred_region
    _
  $region13: #{neuralnet_forward.1} parent=0 // pred_fallthru
    _
  // Predicated region
  $region14: #{neuralnet_forward.1} parent=0 // pred_check
    _
  $region15: #{neuralnet_forward.1} parent=0 // pred_check_branch
    %17 = sbr.rel (0) target = $region17
  $region16: #{neuralnet_forward.1} parent=0 // pred_region
    _
  $region17: #{neuralnet_forward.1} parent=0 // pred_fallthru
    _
  // Predicated region
  $region18: #{neuralnet_forward.1} parent=0 // pred_check
    _
  $region19: #{neuralnet_forward.1} parent=0 // pred_check_branch
    %19 = sbr.rel (0) target = $region21
  $region20: #{neuralnet_forward.1} parent=0 // pred_region
    _
  $region21: #{neuralnet_forward.1} parent=0 // pred_fallthru
    _
  %v20 = vld [vmem:[%s0] sm:$0xff]
  %v21 = vld [vmem:[%s1] sm:$0xff]
  %v22 = vld [vmem:[%s1 + $0x8] sm:$0xff]
  %v23 = vld [vmem:[%s1 + $0x10] sm:$0xff]
  %v24 = vld [vmem:[%s1 + $0x18] sm:$0xff]
  %v25 = vld [vmem:[%s3] sm:$0xff]
  %v26 = vld [vmem:[%s3 + $0x8] sm:$0xff]
  %v27 = vld [vmem:[%s3 + $0x10] sm:$0xff]
  %v28 = vld [vmem:[%s3 + $0x18] sm:$0xff]
  %v29 = vld [vmem:[%s2] sm:$0x1]
  %v31 = vlaneseq
  %v32 = vshrl.u32 %v31, 7
  %v33 = vsub.s32 0, %v32
  %v34 = vrot.slane %v29, %v33
  %vm36 = vcmask 261120
  %v38 = vsel %vm36, %v20, 0
  %40 = vmatprep.subr.mxu0 0.0
  %41 = vmatpush1.msra.mxu0 0.0
  %42 = vmatprep.subr.mxu0 0.0
  %43 = vmatpush1.msra.mxu0 0.0
  %44 = vmatprep.subr.mxu0 0.0
  %45 = vmatpush1.msra.mxu0 0.0
  %46 = vmatprep.subr.mxu0 0.0
  %47 = vmatpush1.msra.mxu0 0.0
  %48 = vmatprep.subr.mxu0 0.0
  %49 = vmatpush1.msra.mxu0 0.0
  %50 = vmatprep.subr.mxu0 0.0
  %51 = vmatpush1.msra.mxu0 0.0
  %52 = vmatprep.subr.mxu0 0.0
  %53 = vmatpush1.msra.mxu0 0.0
  %54 = vmatprep.subr.mxu0 0.0
  %55 = vmatpush1.msra.mxu0 0.0
  %56 = vmatprep.subr.mxu0 0.0
  %57 = vmatpush1.msra.mxu0 0.0
  %58 = vmatprep.subr.mxu0 0.0
  %59 = vmatpush1.msra.mxu0 0.0
  %60 = vmatprep.subr.mxu0 0.0
  %61 = vmatpush1.msra.mxu0 0.0
  %62 = vmatprep.subr.mxu0 0.0
  %63 = vmatpush1.msra.mxu0 0.0
  %64 = vmatprep.subr.mxu0 0.0
  %65 = vmatpush1.msra.mxu0 %v24
  %66 = vmatprep.subr.mxu0 0.0
  %67 = vmatpush1.msra.mxu0 %v23
  %68 = vmatprep.subr.mxu0 0.0
  %69 = vmatpush1.msra.mxu0 %v22
  %70 = vmatprep.subr.mxu0 0.0
  %71 = vmatpush1.msra.mxu0 %v21
  %72 = vmatprep.subr.mxu0 0.0
  %73 = vmatpush2.msra.mxu0 0.0
  %74 = vmatprep.subr.mxu0 0.0
  %75 = vmatpush2.msra.mxu0 0.0
  %76 = vmatprep.subr.mxu0 0.0
  %77 = vmatpush2.msra.mxu0 0.0
  %78 = vmatprep.subr.mxu0 0.0
  %79 = vmatpush2.msra.mxu0 0.0
  %80 = vmatprep.subr.mxu0 0.0
  %81 = vmatpush2.msra.mxu0 0.0
  %82 = vmatprep.subr.mxu0 0.0
  %83 = vmatpush2.msra.mxu0 0.0
  %84 = vmatprep.subr.mxu0 0.0
  %85 = vmatpush2.msra.mxu0 0.0
  %86 = vmatprep.subr.mxu0 0.0
  %87 = vmatpush2.msra.mxu0 0.0
  %88 = vmatprep.subr.mxu0 0.0
  %89 = vmatpush2.msra.mxu0 0.0
  %90 = vmatprep.subr.mxu0 0.0
  %91 = vmatpush2.msra.mxu0 0.0
  %92 = vmatprep.subr.mxu0 0.0
  %93 = vmatpush2.msra.mxu0 0.0
  %94 = vmatprep.subr.mxu0 0.0
  %95 = vmatpush2.msra.mxu0 0.0
  %96 = vmatprep.subr.mxu0 0.0
  %97 = vmatpush2.msra.mxu0 0.0
  %98 = vmatprep.subr.mxu0 0.0
  %99 = vmatpush2.msra.mxu0 0.0
  %100 = vmatprep.subr.mxu0 0.0
  %101 = vmatpush2.msra.mxu0 0.0
  %102 = vmatprep.subr.mxu0 0.0
  %103 = vmatpush2.msra.mxu0 0.0
  %104 = vmatprep.mubr.f32.mxu0 0.0
  %105 = vmatmul.mubr.f32.gmra.mxu0 %v38
  %v106 = vpop.f32.mrf.mxu0
  %v107 = vadd.f32 %v34, %v106
  %v108 = vpop.f32.mrf.mxu0
  %109 = vdwg.mxu0
  %v110 = vmax.f32 %v107, 0.0
  %v111 = vld [vmem:[%s4] sm:$0x1]
  %v113 = vlaneseq
  %v114 = vshrl.u32 %v113, 7
  %v115 = vsub.s32 0, %v114
  %v116 = vrot.slane %v111, %v115
  %v119 = vsel %vm36, %v110, 0
  %121 = vmatprep.subr.mxu0 0.0
  %122 = vmatpush1.msra.mxu0 0.0
  %123 = vmatprep.subr.mxu0 0.0
  %124 = vmatpush1.msra.mxu0 0.0
  %125 = vmatprep.subr.mxu0 0.0
  %126 = vmatpush1.msra.mxu0 0.0
  %127 = vmatprep.subr.mxu0 0.0
  %128 = vmatpush1.msra.mxu0 0.0
  %129 = vmatprep.subr.mxu0 0.0
  %130 = vmatpush1.msra.mxu0 0.0
  %131 = vmatprep.subr.mxu0 0.0
  %132 = vmatpush1.msra.mxu0 0.0
  %133 = vmatprep.subr.mxu0 0.0
  %134 = vmatpush1.msra.mxu0 0.0
  %135 = vmatprep.subr.mxu0 0.0
  %136 = vmatpush1.msra.mxu0 0.0
  %137 = vmatprep.subr.mxu0 0.0
  %138 = vmatpush1.msra.mxu0 0.0
  %139 = vmatprep.subr.mxu0 0.0
  %140 = vmatpush1.msra.mxu0 0.0
  %141 = vmatprep.subr.mxu0 0.0
  %142 = vmatpush1.msra.mxu0 0.0
  %143 = vmatprep.subr.mxu0 0.0
  %144 = vmatpush1.msra.mxu0 0.0
  %145 = vmatprep.subr.mxu0 0.0
  %146 = vmatpush1.msra.mxu0 %v28
  %147 = vmatprep.subr.mxu0 0.0
  %148 = vmatpush1.msra.mxu0 %v27
  %149 = vmatprep.subr.mxu0 0.0
  %150 = vmatpush1.msra.mxu0 %v26
  %151 = vmatprep.subr.mxu0 0.0
  %152 = vmatpush1.msra.mxu0 %v25
  %153 = vmatprep.subr.mxu0 0.0
  %154 = vmatpush2.msra.mxu0 0.0
  %155 = vmatprep.subr.mxu0 0.0
  %156 = vmatpush2.msra.mxu0 0.0
  %157 = vmatprep.subr.mxu0 0.0
  %158 = vmatpush2.msra.mxu0 0.0
  %159 = vmatprep.subr.mxu0 0.0
  %160 = vmatpush2.msra.mxu0 0.0
  %161 = vmatprep.subr.mxu0 0.0
  %162 = vmatpush2.msra.mxu0 0.0
  %163 = vmatprep.subr.mxu0 0.0
  %164 = vmatpush2.msra.mxu0 0.0
  %165 = vmatprep.subr.mxu0 0.0
  %166 = vmatpush2.msra.mxu0 0.0
  %167 = vmatprep.subr.mxu0 0.0
  %168 = vmatpush2.msra.mxu0 0.0
  %169 = vmatprep.subr.mxu0 0.0
  %170 = vmatpush2.msra.mxu0 0.0
  %171 = vmatprep.subr.mxu0 0.0
  %172 = vmatpush2.msra.mxu0 0.0
  %173 = vmatprep.subr.mxu0 0.0
  %174 = vmatpush2.msra.mxu0 0.0
  %175 = vmatprep.subr.mxu0 0.0
  %176 = vmatpush2.msra.mxu0 0.0
  %177 = vmatprep.subr.mxu0 0.0
  %178 = vmatpush2.msra.mxu0 0.0
  %179 = vmatprep.subr.mxu0 0.0
  %180 = vmatpush2.msra.mxu0 0.0
  %181 = vmatprep.subr.mxu0 0.0
  %182 = vmatpush2.msra.mxu0 0.0
  %183 = vmatprep.subr.mxu0 0.0
  %184 = vmatpush2.msra.mxu0 0.0
  %185 = vmatprep.mubr.f32.mxu0 0.0
  %186 = vmatmul.mubr.f32.gmra.mxu0 %v119
  %v187 = vpop.f32.mrf.mxu0
  %v188 = vadd.f32 %v116, %v187
  %v189 = vpop.f32.mrf.mxu0
  %190 = vdwg.mxu0
  %v191 = vmul.f32 %v188, 0.5
  %v192 = vtanh.pop %v191
  %v193 = vmul.f32 %v192, 0.5
  %v194 = vadd.f32 %v193, 0.5
  %v195 = vlaneseq
  %v196 = vand.u32 %v195, 127
  %vm197 = vcmp.lt.s32.totalorder %v196, 1
  %v198 = vsel %vm197, %v194, %v188
  %vm199 = vcmask 64512
  %200 = vst.msk [vmem:[%s5] sm:$0xff] %vm199, %v198
  // Predicated region
  $region22: #{neuralnet_forward.1} parent=0 // pred_check
    _
  $region23: #{neuralnet_forward.1} parent=0 // pred_check_branch
    %202 = sbr.rel (0) target = $region25
  $region24: #{neuralnet_forward.1} parent=0 // pred_region
    _
  $region25: #{neuralnet_forward.1} parent=0 // pred_fallthru
    _
  // Predicated region
  $region26: #{neuralnet_forward.1} parent=0 // pred_check
    _
  $region27: #{neuralnet_forward.1} parent=0 // pred_check_branch
    %204 = sbr.rel (0) target = $region29
  $region28: #{neuralnet_forward.1} parent=0 // pred_region
    _
  $region29: #{neuralnet_forward.1} parent=0 // pred_fallthru
    _

</llo_original>
